<compile_context>
chip_gen: v7x
topology: tpu7x:2x2x1
jax: 0.10.0
libtpu: 0.0.40
codegen_flags: <defaults>
</compile_context>

<pallas_src>
import math

import jax
import jax.numpy as jnp
from jax.experimental import pallas as pl
from jax.experimental.pallas import tpu as pltpu

LANE = 128
MAX_TILE_ROWS = 1024                 # (1024,128) f32 tile = 512 KiB per buffer
DEFAULT_MIN_PALLAS_ELEMS = 16384     # below this, plain XLA is faster than a launch
_LN2 = math.log(2.0)                 # BCE contribution of a zero-padded (x=0,y=0) elem


# --------------------------------------------------------------------------- kernels
def _sum_kernel(x_ref, out_ref, acc_ref):
    """Partial sum of a lane-dense slab; no masks, pure streaming accumulate."""
    i = pl.program_id(0)

    @pl.when(i == 0)
    def _():
        acc_ref[...] = jnp.zeros_like(acc_ref)

    acc_ref[...] += x_ref[...].astype(jnp.float32)          # VPU-only hot loop

    @pl.when(i == pl.num_programs(0) - 1)
    def _():
        out_ref[0, 0] = jnp.sum(acc_ref[...])                # single XLU reduce


def _bce_sum_kernel(x_ref, y_ref, out_ref, acc_ref):
    """Partial sum of elementwise BCEWithLogits; no masks (pad corrected outside)."""
    i = pl.program_id(0)

    @pl.when(i == 0)
    def _():
        acc_ref[...] = jnp.zeros_like(acc_ref)

    x = x_ref[...].astype(jnp.float32)
    y = y_ref[...].astype(jnp.float32)
    # numerically stable BCEWithLogits (same as torch):
    #   max(x,0) - x*y + log1p(exp(-|x|))     (exp / log1p run on the EUP slot)
    acc_ref[...] += jnp.maximum(x, 0.0) - x * y + jnp.log1p(jnp.exp(-jnp.abs(x)))

    @pl.when(i == pl.num_programs(0) - 1)
    def _():
        out_ref[0, 0] = jnp.sum(acc_ref[...])


# ------------------------------------------------------------------------- wrappers
def _bce_elems(x, y):
    x = x.astype(jnp.float32)
    y = y.astype(jnp.float32)
    return jnp.maximum(x, 0.0) - x * y + jnp.log1p(jnp.exp(-jnp.abs(x)))


def _lane_slab(x):
    """Flatten (free bitcast); zero-pad by <128 elems only if lane-ragged."""
    flat = jnp.asarray(x).reshape(-1)
    n = flat.size
    pad = (-n) % LANE
    if pad:
        flat = jnp.pad(flat, (0, pad))
    return flat.reshape(-1, LANE), n, pad


def _tiling(rows):
    """Pick (tile_rows, n_tiles, tail_rows) so no grid block is ever out of bounds."""
    if rows <= MAX_TILE_ROWS:
        return rows, 1, 0                        # one block == full array (always legal)
    n_tiles = rows // MAX_TILE_ROWS
    return MAX_TILE_ROWS, n_tiles, rows - n_tiles * MAX_TILE_ROWS


def _tiled_reduce(kernel, slabs, tile_rows, n_tiles):
    """Pipelined 1-D-grid reduction to a single SMEM scalar."""
    idx_map = lambda i: (i, 0)
    out = pl.pallas_call(
        kernel,
        out_shape=jax.ShapeDtypeStruct((1, 1), jnp.float32),
        grid=(n_tiles,),
        in_specs=[pl.BlockSpec((tile_rows, LANE), idx_map)] * len(slabs),
        out_specs=pl.BlockSpec((1, 1), lambda i: (0, 0),
                               memory_space=pltpu.MemorySpace.SMEM),
        scratch_shapes=[pltpu.VMEM((tile_rows, LANE), jnp.float32)],
        compiler_params=pltpu.CompilerParams(
            dimension_semantics=("arbitrary",)),          # reduction axis
    )(*slabs)
    return out[0, 0]


def _mean_pallas(x, min_pallas_elems):
    n = x.size
    if n < max(min_pallas_elems, 1):                      # small-size XLA fallback
        return jnp.mean(jnp.asarray(x).astype(jnp.float32))
    slab, n, _pad = _lane_slab(x)                         # zero pads add 0 to a sum
    tile_rows, n_tiles, tail_rows = _tiling(slab.shape[0])
    total = _tiled_reduce(_sum_kernel, [slab], tile_rows, n_tiles)
    if tail_rows:                                         # <1 tile leftover rows
        total = total + jnp.sum(slab[n_tiles * tile_rows:, :].astype(jnp.float32))
    return total * jnp.float32(1.0 / n)                   # reciprocal multiply


def _bce_mean_pallas(x, y, min_pallas_elems):
    n = x.size
    if n < max(min_pallas_elems, 1):                      # small-size XLA fallback
        return jnp.mean(_bce_elems(jnp.asarray(x).reshape(-1),
                                   jnp.asarray(y).reshape(-1)))
    x_slab, n, pad = _lane_slab(x)
    y_slab, _, _ = _lane_slab(y)
    tile_rows, n_tiles, tail_rows = _tiling(x_slab.shape[0])
    total = _tiled_reduce(_bce_sum_kernel, [x_slab, y_slab], tile_rows, n_tiles)
    if tail_rows:                                         # <1 tile leftover rows
        r0 = n_tiles * tile_rows
        total = total + jnp.sum(_bce_elems(x_slab[r0:, :], y_slab[r0:, :]))
    if pad:
        # each zero-padded (x=0, y=0) element contributes exactly ln(2) to the sum
        total = total - jnp.float32(pad * _LN2)
    return total * jnp.float32(1.0 / n)


def taco_glow_loss(model_output, targets, *,
                   min_pallas_elems=DEFAULT_MIN_PALLAS_ELEMS):
    """JAX/Pallas equivalent of TacoGlowLoss.forward.

    model_output = (nll, gate_out, _anything) ; targets = (_anything, gate_target)
    returns (glow_loss, gate_loss) as float32 scalars.
    """
    nll, gate_out, _ = model_output
    gate_target = targets[1]
    # torch's `gate_target.requires_grad = False` is an autograd-only flag (no forward
    # effect); use lax.stop_gradient at the call site when differentiating.
    # TODO(synk): no custom_vjp is defined for the pallas_calls; for training either
    # add one (grad of a mean / BCE is a cheap elementwise kernel) or keep a pure-JAX
    # path for the backward.
    nll = jnp.asarray(nll)
    gate_out = jnp.asarray(gate_out)
    gate_target = jnp.asarray(gate_target)
    assert gate_out.size == gate_target.size

    # TODO(synk): when nll and gate_out share a slab layout the two reductions could
    # be fused into one pallas_call (3 inputs, 2 SMEM outputs, 2 accumulators).
    glow_loss = _mean_pallas(nll, min_pallas_elems)
    gate_loss = _bce_mean_pallas(gate_out, gate_target, min_pallas_elems)
    return glow_loss, gate_loss


# ------------------------------------------------------------------------ reference
def _reference(model_output, targets):
    nll, gate_out, _ = model_output
    gate_target = targets[1]
    glow = jnp.mean(nll.astype(jnp.float32))
    gate = jnp.mean(_bce_elems(gate_out.reshape(-1), gate_target.reshape(-1)))
    return glow, gate


if __name__ == "__main__":
    key = jax.random.PRNGKey(0)
    k1, k2, k3, k4, k5, k6 = jax.random.split(key, 6)

    # ---- small shapes implied by the module: batch=2, n_mel=8, T_out=16 -----------
    B, T_out, n_mel = 2, 16, 8
    nll = jax.random.normal(k1, (B, T_out), dtype=jnp.float32)
    gate_out = jax.random.normal(k2, (B, T_out), dtype=jnp.float32) * 3.0
    extra = jnp.zeros((B, n_mel, T_out), dtype=jnp.float32)
    mel_target = jax.random.normal(k3, (B, n_mel, T_out), dtype=jnp.float32)
    gate_target = (jax.random.uniform(k4, (B, T_out)) > 0.5).astype(jnp.float32)
    model_output = (nll, gate_out, extra)
    targets = (mel_target, gate_target)

    # force the Pallas path even at tiny sizes (single-block kernels)
    glow_loss, gate_loss = taco_glow_loss(model_output, targets, min_pallas_elems=0)
    jax.block_until_ready((glow_loss, gate_loss))
    ref_glow, ref_gate = _reference(model_output, targets)
    assert jnp.allclose(glow_loss, ref_glow, rtol=1e-5, atol=1e-5), (glow_loss, ref_glow)
    assert jnp.allclose(gate_loss, ref_gate, rtol=1e-5, atol=1e-5), (gate_loss, ref_gate)

    # ---- larger, lane-ragged shapes: exercises the multi-tile grid, the XLA tail
    #      epilogue and the ln(2) pad correction (default threshold -> Pallas path) --
    nll2 = jax.random.normal(k5, (4, 9973), dtype=jnp.float32)          # 39_892 elems
    gate_out2 = jax.random.normal(k6, (4, 70001), dtype=jnp.float32)    # 280_004 elems
    gate_target2 = (jax.random.uniform(k4, (4, 70001)) > 0.5).astype(jnp.float32)
    mo2 = (nll2, gate_out2, extra)
    tg2 = (mel_target, gate_target2)
    glow2, gate2 = taco_glow_loss(mo2, tg2)
    jax.block_until_ready((glow2, gate2))
    ref_glow2, ref_gate2 = _reference(mo2, tg2)
    assert jnp.allclose(glow2, ref_glow2, rtol=1e-5, atol=1e-5), (glow2, ref_glow2)
    assert jnp.allclose(gate2, ref_gate2, rtol=1e-5, atol=1e-5), (gate2, ref_gate2)

    print("KERNEL_OK")
</pallas_src>

<mosaic_0001>
module attributes {stable_mosaic.version = 11 : i64} {
  func.func @_sum_kernel(%arg0: i32, %arg1: memref<1x128xf32, #tpu.memory_space<vmem>>, %arg2: memref<1x1xf32, #tpu.memory_space<smem>>, %arg3: memref<1x128xf32, #tpu.memory_space<vmem>>) attributes {dimension_semantics = [#tpu.dimension_semantics<arbitrary>], iteration_bounds = array<i64: 1>, scalar_prefetch = 0 : i64, scratch_operands = 1 : i64, tpu.core_type = #tpu.core_type<tc>, window_params = [{transform_indices = @transform_0, window_bounds = array<i64: 1, 128>}, {transform_indices = @transform_1, window_bounds = array<i64: 1, 1>}]} {
    %c0_i32 = arith.constant 0 : i32
    %0 = arith.cmpi eq, %arg0, %c0_i32 : i32
    %1 = arith.extui %0 : i1 to i32
    %c0_i32_0 = arith.constant 0 : i32
    %2 = arith.cmpi ne, %1, %c0_i32_0 : i32
    scf.if %2 {
      %cst = arith.constant 0.000000e+00 : f32
      %10 = vector.broadcast %cst : f32 to vector<1x128xf32>
      %c0_8 = arith.constant 0 : index
      %c0_9 = arith.constant 0 : index
      %11 = vector.load %arg3[%c0_8, %c0_9] : memref<1x128xf32, #tpu.memory_space<vmem>>, vector<1x128xf32>
      tpu.vector_store %arg3[%c0_8, %c0_9], %10 {strides = array<i32>} : memref<1x128xf32, #tpu.memory_space<vmem>>, vector<1x128xf32>,
    } else {
    }
    %c0 = arith.constant 0 : index
    %c0_1 = arith.constant 0 : index
    %3 = vector.load %arg3[%c0, %c0_1] : memref<1x128xf32, #tpu.memory_space<vmem>>, vector<1x128xf32>
    %c0_2 = arith.constant 0 : index
    %c0_3 = arith.constant 0 : index
    %4 = vector.load %arg1[%c0_2, %c0_3] : memref<1x128xf32, #tpu.memory_space<vmem>>, vector<1x128xf32>
    %5 = arith.addf %3, %4 : vector<1x128xf32>
    %c0_4 = arith.constant 0 : index
    %c0_5 = arith.constant 0 : index
    %6 = vector.load %arg3[%c0_4, %c0_5] : memref<1x128xf32, #tpu.memory_space<vmem>>, vector<1x128xf32>
    tpu.vector_store %arg3[%c0_4, %c0_5], %5 {strides = array<i32>} : memref<1x128xf32, #tpu.memory_space<vmem>>, vector<1x128xf32>,
    %c0_i32_6 = arith.constant 0 : i32
    %7 = arith.cmpi eq, %arg0, %c0_i32_6 : i32
    %8 = arith.extui %7 : i1 to i32
    %c0_i32_7 = arith.constant 0 : i32
    %9 = arith.cmpi ne, %8, %c0_i32_7 : i32
    scf.if %9 {
      %c0_8 = arith.constant 0 : index
      %c0_9 = arith.constant 0 : index
      %10 = vector.load %arg3[%c0_8, %c0_9] : memref<1x128xf32, #tpu.memory_space<vmem>>, vector<1x128xf32>
      %11 = vector.shape_cast %10 : vector<1x128xf32> to vector<1x1x128xf32>
      %cst = arith.constant dense<0.000000e+00> : vector<1xf32>
      %12 = vector.multi_reduction <add>, %11, %cst [1, 2] : vector<1x1x128xf32> to vector<1xf32>
      %13 = vector.shape_cast %12 : vector<1xf32> to vector<1x1x1xf32>
      %14 = vector.extract %13[0, 0, 0] : f32 from vector<1x1x1xf32>
      %c0_10 = arith.constant 0 : index
      %c0_11 = arith.constant 0 : index
      %15 = memref.load %arg2[%c0_10, %c0_11] : memref<1x1xf32, #tpu.memory_space<smem>>
      memref.store %14, %arg2[%c0_10, %c0_11] : memref<1x1xf32, #tpu.memory_space<smem>>
    } else {
    }
    return
  }
  func.func @transform_0(%arg0: i32) -> (i32, i32) {
    %c0_i32 = arith.constant 0 : i32
    %c0_i32_0 = arith.constant 0 : i32
    return %arg0, %c0_i32 : i32, i32
  }
  func.func @transform_1(%arg0: i32) -> (i32, i32) {
    %c0_i32 = arith.constant 0 : i32
    %c0_i32_0 = arith.constant 0 : i32
    %c0_i32_1 = arith.constant 0 : i32
    return %c0_i32, %c0_i32_0 : i32, i32
  }
}

</mosaic_0001>

<llo_original>
// kernel: tpu_custom_call.1
$region0: #{tpu_custom_call.1}
  #allocation0 [shape = 'u32[]', space=smem, size = 0x4, offset = 0x4, fixed_abs, tag = 'smem constant byte address 0x4 - core index']
  #allocation1 [shape = 'u32[144,128]{1,0:T(1,128)}', space=vmem, size = 0x12000, scoped, tag = 'internal scratch']
  #allocation2 [shape = 'f32[1,128]{1,0:T(1,128)}', space=vmem, size = 0x200, scoped, tag = 'scratch operand']
  %s0 = inlined_call_operand.hbm [shape: f32[1,128], index: 0, kind: input, shape index: {}]
  %s1 = inlined_call_operand.hbm [shape: f32[1,1], index: 1, kind: output, shape index: {}]
  %s2 = sld [smem:[#allocation0]]
  $region26: #{tpu_custom_call.1} parent=0
    _
  %s4 = ssub.s32 1, %s2
  %s5 = scalar_select 0, %s4, %s2
  $region1: #{tpu_custom_call.1} parent=0
    #allocation3 [shape = 'u8[512]{0}', space=vmem, size = 0x400, scoped, tag = 'input window, operand 0, single buffered']
    #allocation4 [shape = 's32[1]{0}', space=sflag, size = 0x4, scoped, tag = 'scoped memory for tpu_custom_call.1']
    #allocation5 [shape = 's32[1]{0}', space=sflag, size = 0x4, scoped, tag = 'scoped memory for tpu_custom_call.1']
    #allocation6 [shape = 'u8[512]{0}', space=smem, size = 0x200, scoped, tag = 'output window, operand 0, single buffered']
    %6 = vsyncpa [#allocation4], 0
    %7 = vsyncpa [#allocation5], 0
    // Predicated region
    $region2: #{tpu_custom_call.1} parent=1 // pred_check
      _
    $region3: #{tpu_custom_call.1} parent=1 // pred_check_branch
      %9 = sbr.rel (0) target = $region5
    $region4: #{tpu_custom_call.1} parent=1 // pred_region
      %s11 = ssub.s32 16, 16
      %12 = vsyncadd [#allocation4], %s11
      %s14 = sshll.u32 [#allocation3], 4
      %s15 = int_to_ptr.vmem [resolvable:$true] %s14
      %17 = dma.hbm_to_vmem [thread:$0]  %s0, 16, %s15, [#allocation4]
    $region5: #{tpu_custom_call.1} parent=1 // pred_fallthru
      _
    // Predicated region
    $region6: #{tpu_custom_call.1} parent=1 // pred_check
      _
    $region7: #{tpu_custom_call.1} parent=1 // pred_check_branch
      %19 = sbr.rel (0) target = $region9
    $region8: #{tpu_custom_call.1} parent=1 // pred_region
      %20 = dma.done [#allocation4], 16
    $region9: #{tpu_custom_call.1} parent=1 // pred_fallthru
      _
    %p21 = scmp.eq.s32.totalorder 0, 0
    // Predicated region
    $region10: #{tpu_custom_call.1} parent=1 // pred_check
      %p22 = pneg %p21
    $region11: #{tpu_custom_call.1} parent=1 // pred_check_branch
      %24 = sbr.rel (%p22) target = $region13
    $region12: #{tpu_custom_call.1} parent=1 // pred_region
      %25 = vst [vmem:[#allocation2] sm:$0x1] 0.0
    $region13: #{tpu_custom_call.1} parent=1 // pred_fallthru
      _
    %v26 = vld [vmem:[#allocation2] sm:$0x1]
    %v27 = vld [vmem:[#allocation3] sm:$0x1]
    %v28 = vadd.f32 %v26, %v27
    %29 = vst [vmem:[#allocation2] sm:$0x1] %v28
    // Predicated region
    $region14: #{tpu_custom_call.1} parent=1 // pred_check
      %p30 = pneg %p21
    $region15: #{tpu_custom_call.1} parent=1 // pred_check_branch
      %32 = sbr.rel (%p30) target = $region17
    $region16: #{tpu_custom_call.1} parent=1 // pred_region
      %v33 = vld [vmem:[#allocation2] sm:$0x1]
      %vm34 = vcmask 1040384
      %v35 = vsel %vm34, %v33, 0.0
      %36 = vadd.xlane.f32.xlu0 %v35
      %v37 = vpop.xlane.xlu0 %36
      %v38 = vrot.slane %v37, 4
      %v39 = vadd.f32 %v37, %v38
      %v40 = vrot.slane %v39, 2
      %v41 = vadd.f32 %v39, %v40
      %v42 = vrot.slane %v41, 1
      %v43 = vadd.f32 %v41, %v42
      %s44 = vtos %v43
      %s45 = scalar_lea.smem [#allocation6], 0
      %46 = sst [smem:[%s45]] %s44
    $region17: #{tpu_custom_call.1} parent=1 // pred_fallthru
      _
    // Predicated region
    $region18: #{tpu_custom_call.1} parent=1 // pred_check
      _
    $region19: #{tpu_custom_call.1} parent=1 // pred_check_branch
      %48 = sbr.rel (0) target = $region21
    $region20: #{tpu_custom_call.1} parent=1 // pred_region
      %s50 = ssub.s32 16, 16
      %51 = vsyncadd [#allocation5], %s50
      %54 = dma.smem_to_hbm [#allocation6], 16, %s1, [#allocation5]
    $region21: #{tpu_custom_call.1} parent=1 // pred_fallthru
      _
    // Predicated region
    $region22: #{tpu_custom_call.1} parent=1 // pred_check
      _
    $region23: #{tpu_custom_call.1} parent=1 // pred_check_branch
      %56 = sbr.rel (0) target = $region25
    $region24: #{tpu_custom_call.1} parent=1 // pred_region
      %57 = dma.done [#allocation5], 16
    $region25: #{tpu_custom_call.1} parent=1 // pred_fallthru
      _
    %58 = sfence
    %59 = vsyncpa [#allocation4], 1
    %60 = vsyncpa [#allocation5], 1

</llo_original>
